<compile_context>
chip_gen: v5e
topology: v5e:2x2
jax: 0.10.0
libtpu: 0.0.40
codegen_flags: <defaults>
</compile_context>

<pallas_src>
import math

import jax
import jax.numpy as jnp
from jax import lax
from jax.experimental import pallas as pl
from jax.experimental.pallas import tpu as pltpu
import numpy as np

_STAT_LANES = 128   # width of the per-channel partial-stat accumulators


def _vmem_budget():
    """(per-tile VMEM budget, scoped vmem_limit_bytes) derived from the chip."""
    cap = 64 * 1024 * 1024
    try:
        cap = int(getattr(pltpu.get_tpu_info(), "vmem_capacity_bytes", cap))
    except Exception:
        pass
    tile_budget = min(cap // 2, 80 * 1024 * 1024)       # v7x ~32 MiB, v5e/v6e ~64 MiB
    vmem_limit = min(int(cap * 0.9), 112 * 1024 * 1024)
    return tile_budget, vmem_limit


def _pad_rows(a, rows):
    pad = rows - a.shape[0]
    return a if pad == 0 else jnp.pad(a, ((0, pad), (0, 0)))


def _build_masks(offsets, mode, H, W, inv, imgs_per_tile, cpad):
    """(K*cpad, tile_p) f32 per-tap validity masks, replicated to cpad sublanes.

    Channel replication turns the in-kernel `shifted_x * mask` into a plain VPU
    multiply (no per-tap 1->cpad sublane broadcast on the contended XLU path).
    TODO(synk): for very large Cin keep a (K, 8, tile_p) mask and lane-tile it
                in-kernel instead of materializing the full replication.
    """
    yy, xx = np.meshgrid(np.arange(H), np.arange(W), indexing="ij")
    yy = yy.reshape(-1)
    xx = xx.reshape(-1)
    rows = []
    for dy, dx in offsets:
        if mode == "block":      # tap valid only inside the same (inv x inv) block
            v = ((yy % inv + dy >= 0) & (yy % inv + dy < inv)
                 & (xx % inv + dx >= 0) & (xx % inv + dx < inv))
        else:                    # "image": tap valid only inside the image
            v = ((yy + dy >= 0) & (yy + dy < H)
                 & (xx + dx >= 0) & (xx + dx < W))
        rows.append(v)
    m = np.stack(rows, axis=0).astype(np.float32)            # (K, H*W)
    m = np.tile(m, (1, imgs_per_tile))                       # (K, tile_p)
    m = np.repeat(m[:, None, :], cpad, axis=1)               # (K, cpad, tile_p)
    return jnp.asarray(m.reshape(-1, m.shape[-1]))           # (K*cpad, tile_p)


def cocov_stats_pallas(x_cp, mask, w, in_scale, in_bias, *, shifts, cout,
                       apply_in_act, stacked, tile_p, split, compute_dtype,
                       out_dtype, vmem_limit):
    """Fused (optional input BN+ReLU) + 9-tap CoCov conv + per-channel sum/sumsq.

    x_cp    : (Cpad, P)          channel-major input (channels zero-padded to x8)
    mask    : (K*Cpad, tile_p)   channel-replicated per-tap validity masks (f32)
    w       : (Cout, K*Cpad)     tap-stacked weights                (stacked=True)
              (K, Cout, Cpad)    per-tap weights                    (stacked=False)
    in_scale/in_bias : (Cpad, 1) folded BN of the previous stage (if any)
    Returns (y_raw, psum, psq): pre-BN conv output (out_dtype) and f32 per-channel
    lane-wide partial sums / sumsq of shape (split, Cout, 128).
    """
    cpad, P = x_cp.shape
    K = len(shifts)
    num_tiles = P // tile_p
    tiles_per_split = num_tiles // split
    lane_stats = (tile_p % _STAT_LANES == 0)
    SW = _STAT_LANES

    def kernel(x_ref, m_ref, w_ref, sc_ref, bi_ref,
               y_ref, psum_ref, psq_ref, *scratch):
        t = pl.program_id(1)
        x = x_ref[...].astype(jnp.float32)
        if apply_in_act:
            # previous stage's folded BatchNorm + ReLU fused into the input path
            x = jnp.maximum(x * sc_ref[...] + bi_ref[...], 0.0)

        # NOTE: shifts are the non-negative (mod tile_p) rotation amounts; masks
        # zero every lane whose tap would cross an image/block boundary, so the
        # wrap-around of the rotation never leaks data between images.
        if stacked:
            # (K*Cpad, tile_p) stacked operand (compute dtype) -> ONE MXU matmul
            # with contraction K*Cpad.  Used when Cpad is small.
            stack_ref, = scratch
            for k, shift in enumerate(shifts):
                xs = pltpu.roll(x, shift, axis=1) if shift else x
                stack_ref[k * cpad:(k + 1) * cpad, :] = (
                    xs * m_ref[k * cpad:(k + 1) * cpad, :]).astype(compute_dtype)
            acc = jnp.dot(w_ref[...], stack_ref[...],
                          preferred_element_type=jnp.float32)
        else:
            # Per-tap MXU accumulation: no K*Cpad*tile_p scratch and no 9x stack
            # stores; used when Cpad alone already fills the MXU contraction.
            acc = None
            for k, shift in enumerate(shifts):
                xs = pltpu.roll(x, shift, axis=1) if shift else x
                xm = (xs * m_ref[k * cpad:(k + 1) * cpad, :]).astype(compute_dtype)
                d = jnp.dot(w_ref[k], xm, preferred_element_type=jnp.float32)
                acc = d if acc is None else acc + d

        y_ref[...] = acc.astype(y_ref.dtype)

        @pl.when(t == 0)
        def _init():
            psum_ref[...] = jnp.zeros_like(psum_ref)
            psq_ref[...] = jnp.zeros_like(psq_ref)

        if lane_stats:
            # Lane-wide partial stats: VPU adds over 128-lane aligned slices of
            # acc (no cross-lane XLU reduce in the kernel; final fold in JAX).
            ps = jnp.zeros((cout, SW), jnp.float32)
            pq = jnp.zeros((cout, SW), jnp.float32)
            for c in range(tile_p // SW):
                sl = acc[:, c * SW:(c + 1) * SW]
                ps = ps + sl
                pq = pq + sl * sl
        else:
            # Fallback for non-128-aligned tiles: XLU reduce into lane 0 only.
            lane0 = (lax.broadcasted_iota(jnp.int32, (cout, SW), 1) == 0)
            lane0 = lane0.astype(jnp.float32)
            ps = jnp.sum(acc, axis=1, keepdims=True) * lane0
            pq = jnp.sum(acc * acc, axis=1, keepdims=True) * lane0
        psum_ref[...] = psum_ref[...] + ps[None, :, :]
        psq_ref[...] = psq_ref[...] + pq[None, :, :]

    if stacked:
        w_spec = pl.BlockSpec((cout, K * cpad), lambda c, t: (0, 0))
        scratch_shapes = [pltpu.VMEM((K * cpad, tile_p), compute_dtype)]
    else:
        w_spec = pl.BlockSpec((K, cout, cpad), lambda c, t: (0, 0, 0))
        scratch_shapes = []

    return pl.pallas_call(
        kernel,
        out_shape=(jax.ShapeDtypeStruct((cout, P), out_dtype),
                   jax.ShapeDtypeStruct((split, cout, SW), jnp.float32),
                   jax.ShapeDtypeStruct((split, cout, SW), jnp.float32)),
        grid=(split, tiles_per_split),
        in_specs=[
            pl.BlockSpec((cpad, tile_p),
                         lambda c, t: (0, c * tiles_per_split + t)),
            pl.BlockSpec((K * cpad, tile_p), lambda c, t: (0, 0)),
            w_spec,
            pl.BlockSpec((cpad, 1), lambda c, t: (0, 0)),
            pl.BlockSpec((cpad, 1), lambda c, t: (0, 0)),
        ],
        out_specs=(
            pl.BlockSpec((cout, tile_p),
                         lambda c, t: (0, c * tiles_per_split + t)),
            pl.BlockSpec((1, cout, SW), lambda c, t: (c, 0, 0)),
            pl.BlockSpec((1, cout, SW), lambda c, t: (c, 0, 0)),
        ),
        scratch_shapes=scratch_shapes,
        compiler_params=pltpu.CompilerParams(
            # leading axis: per-core tile range (megacore on v7x, plain loop on
            # 1-TC chips); inner axis: cross-tile BN-stat accumulation.
            dimension_semantics=("parallel", "arbitrary"),
            vmem_limit_bytes=vmem_limit),
    )(x_cp, mask, w, in_scale, in_bias)


def _pick_finalize_tile(P, max_lanes=32768):
    """Largest multiple-of-128 divisor of P (<= max_lanes); P itself otherwise."""
    if P % 128 != 0:
        return P
    cap = min(P, max_lanes)
    for t in range(cap - cap % 128, 127, -128):
        if P % t == 0:
            return t
    return P


def bn_relu_pallas(y_raw, scale, bias, *, vmem_limit):
    """Folded-BatchNorm finalize: max(y*scale + bias, 0).

    Purely HBM-bound, so it gets its own large lane-dense blocks (decoupled from
    the conv tile size) and a fully "parallel" grid axis."""
    cout, P = y_raw.shape
    tp = _pick_finalize_tile(P)
    num_tiles = P // tp

    def kernel(y_ref, s_ref, b_ref, o_ref):
        y = y_ref[...].astype(jnp.float32)
        o_ref[...] = jnp.maximum(y * s_ref[...] + b_ref[...], 0.0)

    return pl.pallas_call(
        kernel,
        out_shape=jax.ShapeDtypeStruct((cout, P), jnp.float32),
        grid=(num_tiles,),
        in_specs=[
            pl.BlockSpec((cout, tp), lambda i: (0, i)),
            pl.BlockSpec((cout, 1), lambda i: (0, 0)),
            pl.BlockSpec((cout, 1), lambda i: (0, 0)),
        ],
        out_specs=pl.BlockSpec((cout, tp), lambda i: (0, i)),
        compiler_params=pltpu.CompilerParams(
            dimension_semantics=("parallel",),
            vmem_limit_bytes=vmem_limit),
    )(y_raw, scale, bias)


def _fold_bn(psum, psq, gamma, beta, count, eps):
    """Fold training-mode batch statistics + affine into per-channel scale/bias.

    psum/psq are (split, Cout, 128) lane-wide partials from the conv kernel; the
    tiny final cross-lane / cross-core fold happens here in plain JAX (f32)."""
    ssum = jnp.sum(psum, axis=(0, 2))
    ssq = jnp.sum(psq, axis=(0, 2))
    mean = ssum / count
    var = jnp.maximum(ssq / count - mean * mean, 0.0)   # biased variance, one pass
    scale = gamma * lax.rsqrt(var + eps)
    bias = beta - mean * scale
    return scale.reshape(-1, 1), bias.reshape(-1, 1)


def _pick_imgs_per_tile(N, img_lanes, cpad, cout, K, cbytes, stacked, budget,
                        max_tile_lanes):
    """Largest whole-image tile (in images) whose per-tile VMEM estimate fits."""
    cap_lanes = max_tile_lanes if max_tile_lanes is not None else 32768

    def est(tp):
        e = 2 * cpad * tp * cbytes                        # input (double-buffered)
        e += 2 * cout * tp * cbytes                       # output (double-buffered)
        e += K * cpad * tp * 4                            # channel-replicated masks
        e += (K * cpad * tp * cbytes) if stacked else 0   # stacked operand scratch
        e += cout * tp * 4                                # f32 accumulator headroom
        return e

    divisors = [m for m in range(1, N + 1) if N % m == 0]

    def fits(m):
        tp = m * img_lanes
        return m == 1 or (tp <= cap_lanes and est(tp) <= budget)

    aligned = [m for m in divisors if fits(m) and (m * img_lanes) % 128 == 0]
    anyfit = [m for m in divisors if fits(m)]
    if aligned:
        return max(aligned)
    return max(anyfit) if anyfit else 1


def unit4d_pallas(x_nchw, w_s, w_t_taps, g_s, b_s, g_t, b_t, t_size, eps=1e-3,
                  compute_dtype=jnp.bfloat16, stacked=None, max_tile_lanes=None):
    """Unit4d forward (training-mode BatchNorm batch statistics, eps=1e-3).

    compute_dtype : dtype of the matmul operands and of the inter-stage tensor
                    (bf16 by default; acc / stats / BN math stay f32).
    stacked       : None -> auto per stage (stack taps only when the channel
                    contraction is small); True/False -> force.
    """
    N, Cin, H, W = x_nchw.shape
    assert H == W and H % t_size == 0
    inv = H // t_size
    Cout = w_s.shape[0]
    P = N * H * W
    img_lanes = H * W
    K = 9
    cbytes = jnp.dtype(compute_dtype).itemsize

    cin_pad = -(-Cin // 8) * 8        # sublane-align each tap block
    cmid_pad = -(-Cout // 8) * 8
    stacked_s = (cin_pad < 128) if stacked is None else stacked
    stacked_t = (cmid_pad < 128) if stacked is None else stacked

    budget, vmem_limit = _vmem_budget()
    imgs_per_tile = _pick_imgs_per_tile(
        N, img_lanes, max(cin_pad, cmid_pad), Cout, K, cbytes,
        stacked_s or stacked_t, budget, max_tile_lanes)
    tile_p = imgs_per_tile * img_lanes
    if tile_p % 128 != 0 and tile_p != P:
        # TODO(synk): lane-pad partial tiles to a 128 multiple instead of the
        #             single-tile fallback (keeps multi-tile pipelining).
        imgs_per_tile, tile_p = N, P
    num_tiles = P // tile_p
    split = 2 if (num_tiles >= 2 and num_tiles % 2 == 0) else 1

    x_cp = jnp.transpose(x_nchw, (1, 0, 2, 3)).reshape(Cin, P)
    x_cp = _pad_rows(x_cp, cin_pad).astype(compute_dtype)

    # ---- stage s: block-wise 3x3 conv (+ batch stats) ----------------------
    off_s = [(dy, dx) for dy in (-1, 0, 1) for dx in (-1, 0, 1)]
    # NOTE: non-negative (mod tile_p) rotation amount; switch to the minimal-
    # magnitude signed shift if the lowered rolls decompose into extra shuffles.
    shifts_s = [(-(dy * W + dx)) % tile_p for dy, dx in off_s]
    mask_s = _build_masks(off_s, "block", H, W, inv, imgs_per_tile, cin_pad)
    w_s_taps = jnp.transpose(w_s, (2, 3, 0, 1)).reshape(K, Cout, Cin)
    w_s_taps = jnp.pad(w_s_taps, ((0, 0), (0, 0), (0, cin_pad - Cin)))
    if stacked_s:
        w_s_arg = jnp.transpose(w_s_taps, (1, 0, 2)).reshape(Cout, K * cin_pad)
    else:
        w_s_arg = w_s_taps
    w_s_arg = w_s_arg.astype(compute_dtype)
    ones = jnp.ones((cin_pad, 1), jnp.float32)
    zeros = jnp.zeros((cin_pad, 1), jnp.float32)
    y1_raw, ps1, pq1 = cocov_stats_pallas(
        x_cp, mask_s, w_s_arg, ones, zeros, shifts=shifts_s, cout=Cout,
        apply_in_act=False, stacked=stacked_s, tile_p=tile_p, split=split,
        compute_dtype=compute_dtype, out_dtype=compute_dtype,
        vmem_limit=vmem_limit)
    scale1, bias1 = _fold_bn(ps1, pq1, g_s, b_s, float(P), eps)

    # ---- stage t: dilated 3x3 of 1x1 taps, BN_s + ReLU fused into its input -
    off_t = [(inv * dr, inv * dc) for dr in (-1, 0, 1) for dc in (-1, 0, 1)]
    shifts_t = [(-(dy * W + dx)) % tile_p for dy, dx in off_t]
    mask_t = _build_masks(off_t, "image", H, W, inv, imgs_per_tile, cmid_pad)
    w_t = jnp.pad(w_t_taps, ((0, 0), (0, 0), (0, cmid_pad - Cout)))
    if stacked_t:
        w_t_arg = jnp.transpose(w_t, (1, 0, 2)).reshape(Cout, K * cmid_pad)
    else:
        w_t_arg = w_t
    w_t_arg = w_t_arg.astype(compute_dtype)
    y1_in = _pad_rows(y1_raw, cmid_pad)
    scale1_p = _pad_rows(scale1, cmid_pad)
    bias1_p = _pad_rows(bias1, cmid_pad)
    y2_raw, ps2, pq2 = cocov_stats_pallas(
        y1_in, mask_t, w_t_arg, scale1_p, bias1_p, shifts=shifts_t, cout=Cout,
        apply_in_act=True, stacked=stacked_t, tile_p=tile_p, split=split,
        compute_dtype=compute_dtype, out_dtype=compute_dtype,
        vmem_limit=vmem_limit)
    scale2, bias2 = _fold_bn(ps2, pq2, g_t, b_t, float(P), eps)

    # ---- final folded BN_t + ReLU ------------------------------------------
    y2 = bn_relu_pallas(y2_raw, scale2, bias2, vmem_limit=vmem_limit)
    return y2.reshape(Cout, N, H, W).transpose(1, 0, 2, 3)


# ------------------------- pure-JAX reference ------------------------------
def _bn_relu_ref(x, g, b, eps):
    mean = x.mean(axis=(0, 2, 3), keepdims=True)
    var = ((x - mean) ** 2).mean(axis=(0, 2, 3), keepdims=True)
    xh = (x - mean) * lax.rsqrt(var + eps)
    return jnp.maximum(xh * g[None, :, None, None] + b[None, :, None, None], 0.0)


def unit4d_reference(x, w_s, w_t_taps, g_s, b_s, g_t, b_t, t_size, eps=1e-3):
    N, Cin, H, W = x.shape
    inv = H // t_size
    Cout = w_s.shape[0]
    # s_conv: independent 3x3 conv per (inv x inv) block
    xb = x.reshape(N, Cin, t_size, inv, t_size, inv).transpose(0, 2, 4, 1, 3, 5)
    xb = xb.reshape(N * t_size * t_size, Cin, inv, inv)
    yb = lax.conv_general_dilated(
        xb, w_s, (1, 1), ((1, 1), (1, 1)),
        dimension_numbers=("NCHW", "OIHW", "NCHW"),
        precision=lax.Precision.HIGHEST)
    y = yb.reshape(N, t_size, t_size, Cout, inv, inv).transpose(0, 3, 1, 4, 2, 5)
    y = y.reshape(N, Cout, H, W)
    y = _bn_relu_ref(y, g_s, b_s, eps)
    # t_conv: dilated 3x3 conv built from the 9 1x1 kernels
    w_t_full = jnp.transpose(w_t_taps.reshape(3, 3, Cout, Cout), (2, 3, 0, 1))
    z = lax.conv_general_dilated(
        y, w_t_full, (1, 1), ((inv, inv), (inv, inv)), rhs_dilation=(inv, inv),
        dimension_numbers=("NCHW", "OIHW", "NCHW"),
        precision=lax.Precision.HIGHEST)
    return _bn_relu_ref(z, g_t, b_t, eps)


if __name__ == "__main__":
    # Small shapes consistent with Unit4d(in_planes=4, out_planes=8, size=8)
    N, Cin, H, W = 2, 4, 16, 16
    Cout = 8
    t_size = 8           # Unit4d "size"
    eps = 1e-3

    key = jax.random.PRNGKey(0)
    k1, k2, k3, k4, k5, k6, kx = jax.random.split(key, 7)
    # s_conv weight: Conv2d(Cin, Cout, 3), bias=False
    w_s = jax.random.normal(k1, (Cout, Cin, 3, 3), jnp.float32) / math.sqrt(Cin * 9)
    # t_conv weights: 9 x Conv2d(Cout, Cout, 1), bias=False -> (9, Cout, Cout)
    w_t_taps = jax.random.normal(k2, (9, Cout, Cout), jnp.float32) / math.sqrt(Cout)
    # BatchNorm affine parameters
    g_s = jax.random.uniform(k3, (Cout,), jnp.float32, 0.5, 1.5)
    b_s = 0.1 * jax.random.normal(k4, (Cout,), jnp.float32)
    g_t = jax.random.uniform(k5, (Cout,), jnp.float32, 0.5, 1.5)
    b_t = 0.1 * jax.random.normal(k6, (Cout,), jnp.float32)

    x = jax.random.normal(kx, (N, Cin, H, W), jnp.float32)

    ref = unit4d_reference(x, w_s, w_t_taps, g_s, b_s, g_t, b_t, t_size, eps)

    # 1) Exact-math path: f32 operands, stacked-contraction matmul,
    #    max_tile_lanes=256 -> 2 whole-image tiles -> (2, 1) grid exercising the
    #    parallel-core split and cross-tile per-core BN-stat accumulation.
    out_f32 = unit4d_pallas(x, w_s, w_t_taps, g_s, b_s, g_t, b_t, t_size, eps,
                            compute_dtype=jnp.float32, stacked=True,
                            max_tile_lanes=256)
    out_f32 = jax.block_until_ready(out_f32)
    np.testing.assert_allclose(np.asarray(out_f32), np.asarray(ref),
                               rtol=1e-2, atol=1e-2)

    # 2) Fast path (defaults for production): bf16 matmul operands and bf16
    #    inter-stage tensor, per-tap MXU accumulation (no stack scratch),
    #    single whole-batch tile.  bf16 operand rounding -> slightly looser tol.
    out_bf16 = unit4d_pallas(x, w_s, w_t_taps, g_s, b_s, g_t, b_t, t_size, eps,
                             compute_dtype=jnp.bfloat16, stacked=False)
    out_bf16 = jax.block_until_ready(out_bf16)
    np.testing.assert_allclose(np.asarray(out_bf16), np.asarray(ref),
                               rtol=3e-2, atol=3e-2)

    print("KERNEL_OK")
</pallas_src>

<mosaic_0001>
module attributes {stable_mosaic.version = 11 : i64} {
  func.func @kernel(%arg0: i32, %arg1: i32, %arg2: memref<8x256xf32, #tpu.memory_space<vmem>>, %arg3: memref<72x256xf32, #tpu.memory_space<vmem>>, %arg4: memref<8x72xf32, #tpu.memory_space<vmem>>, %arg5: memref<8x1xf32, #tpu.memory_space<vmem>>, %arg6: memref<8x1xf32, #tpu.memory_space<vmem>>, %arg7: memref<8x256xf32, #tpu.memory_space<vmem>>, %arg8: memref<1x8x128xf32, #tpu.memory_space<vmem>>, %arg9: memref<1x8x128xf32, #tpu.memory_space<vmem>>, %arg10: memref<72x256xf32, #tpu.memory_space<vmem>>) attributes {dimension_semantics = [#tpu.dimension_semantics<parallel>, #tpu.dimension_semantics<arbitrary>], iteration_bounds = array<i64: 2, 1>, scalar_prefetch = 0 : i64, scratch_operands = 1 : i64, tpu.core_type = #tpu.core_type<tc>, window_params = [{transform_indices = @transform_0, window_bounds = array<i64: 8, 256>}, {pipeline_mode = #tpu.pipeline_mode<synchronous>, transform_indices = @transform_1, window_bounds = array<i64: 72, 256>}, {pipeline_mode = #tpu.pipeline_mode<synchronous>, transform_indices = @transform_2, window_bounds = array<i64: 8, 72>}, {pipeline_mode = #tpu.pipeline_mode<synchronous>, transform_indices = @transform_3, window_bounds = array<i64: 8, 1>}, {pipeline_mode = #tpu.pipeline_mode<synchronous>, transform_indices = @transform_4, window_bounds = array<i64: 8, 1>}, {transform_indices = @transform_5, window_bounds = array<i64: 8, 256>}, {transform_indices = @transform_6, window_bounds = array<i64: 1, 8, 128>}, {transform_indices = @transform_7, window_bounds = array<i64: 1, 8, 128>}]} {
    %c0 = arith.constant 0 : index
    %c0_0 = arith.constant 0 : index
    %0 = vector.load %arg2[%c0, %c0_0] : memref<8x256xf32, #tpu.memory_space<vmem>>, vector<8x256xf32>
    %c17_i32 = arith.constant 17 : i32
    %1 = tpu.dynamic_rotate %0 by %c17_i32 dim 1 : vector<8x256xf32>, i32 -> vector<8x256xf32>
    %c0_1 = arith.constant 0 : index
    %c0_2 = arith.constant 0 : index
    %2 = vector.load %arg3[%c0_1, %c0_2] : memref<72x256xf32, #tpu.memory_space<vmem>>, vector<8x256xf32>
    %3 = arith.mulf %1, %2 : vector<8x256xf32>
    %c0_3 = arith.constant 0 : index
    %c0_4 = arith.constant 0 : index
    %4 = vector.load %arg10[%c0_3, %c0_4] : memref<72x256xf32, #tpu.memory_space<vmem>>, vector<8x256xf32>
    tpu.vector_store %arg10[%c0_3, %c0_4], %3 {strides = array<i32>} : memref<72x256xf32, #tpu.memory_space<vmem>>, vector<8x256xf32>,
    %c16_i32 = arith.constant 16 : i32
    %5 = tpu.dynamic_rotate %0 by %c16_i32 dim 1 : vector<8x256xf32>, i32 -> vector<8x256xf32>
    %c8 = arith.constant 8 : index
    %c0_5 = arith.constant 0 : index
    %6 = vector.load %arg3[%c8, %c0_5] : memref<72x256xf32, #tpu.memory_space<vmem>>, vector<8x256xf32>
    %7 = arith.mulf %5, %6 : vector<8x256xf32>
    %c8_6 = arith.constant 8 : index
    %c0_7 = arith.constant 0 : index
    %8 = vector.load %arg10[%c8_6, %c0_7] : memref<72x256xf32, #tpu.memory_space<vmem>>, vector<8x256xf32>
    tpu.vector_store %arg10[%c8_6, %c0_7], %7 {strides = array<i32>} : memref<72x256xf32, #tpu.memory_space<vmem>>, vector<8x256xf32>,
    %c15_i32 = arith.constant 15 : i32
    %9 = tpu.dynamic_rotate %0 by %c15_i32 dim 1 : vector<8x256xf32>, i32 -> vector<8x256xf32>
    %c16 = arith.constant 16 : index
    %c0_8 = arith.constant 0 : index
    %10 = vector.load %arg3[%c16, %c0_8] : memref<72x256xf32, #tpu.memory_space<vmem>>, vector<8x256xf32>
    %11 = arith.mulf %9, %10 : vector<8x256xf32>
    %c16_9 = arith.constant 16 : index
    %c0_10 = arith.constant 0 : index
    %12 = vector.load %arg10[%c16_9, %c0_10] : memref<72x256xf32, #tpu.memory_space<vmem>>, vector<8x256xf32>
    tpu.vector_store %arg10[%c16_9, %c0_10], %11 {strides = array<i32>} : memref<72x256xf32, #tpu.memory_space<vmem>>, vector<8x256xf32>,
    %c1_i32 = arith.constant 1 : i32
    %13 = tpu.dynamic_rotate %0 by %c1_i32 dim 1 : vector<8x256xf32>, i32 -> vector<8x256xf32>
    %c24 = arith.constant 24 : index
    %c0_11 = arith.constant 0 : index
    %14 = vector.load %arg3[%c24, %c0_11] : memref<72x256xf32, #tpu.memory_space<vmem>>, vector<8x256xf32>
    %15 = arith.mulf %13, %14 : vector<8x256xf32>
    %c24_12 = arith.constant 24 : index
    %c0_13 = arith.constant 0 : index
    %16 = vector.load %arg10[%c24_12, %c0_13] : memref<72x256xf32, #tpu.memory_space<vmem>>, vector<8x256xf32>
    tpu.vector_store %arg10[%c24_12, %c0_13], %15 {strides = array<i32>} : memref<72x256xf32, #tpu.memory_space<vmem>>, vector<8x256xf32>,
    %c32 = arith.constant 32 : index
    %c0_14 = arith.constant 0 : index
    %17 = vector.load %arg3[%c32, %c0_14] : memref<72x256xf32, #tpu.memory_space<vmem>>, vector<8x256xf32>
    %18 = arith.mulf %0, %17 : vector<8x256xf32>
    %c32_15 = arith.constant 32 : index
    %c0_16 = arith.constant 0 : index
    %19 = vector.load %arg10[%c32_15, %c0_16] : memref<72x256xf32, #tpu.memory_space<vmem>>, vector<8x256xf32>
    tpu.vector_store %arg10[%c32_15, %c0_16], %18 {strides = array<i32>} : memref<72x256xf32, #tpu.memory_space<vmem>>, vector<8x256xf32>,
    %c255_i32 = arith.constant 255 : i32
    %20 = tpu.dynamic_rotate %0 by %c255_i32 dim 1 : vector<8x256xf32>, i32 -> vector<8x256xf32>
    %c40 = arith.constant 40 : index
    %c0_17 = arith.constant 0 : index
    %21 = vector.load %arg3[%c40, %c0_17] : memref<72x256xf32, #tpu.memory_space<vmem>>, vector<8x256xf32>
    %22 = arith.mulf %20, %21 : vector<8x256xf32>
    %c40_18 = arith.constant 40 : index
    %c0_19 = arith.constant 0 : index
    %23 = vector.load %arg10[%c40_18, %c0_19] : memref<72x256xf32, #tpu.memory_space<vmem>>, vector<8x256xf32>
    tpu.vector_store %arg10[%c40_18, %c0_19], %22 {strides = array<i32>} : memref<72x256xf32, #tpu.memory_space<vmem>>, vector<8x256xf32>,
    %c241_i32 = arith.constant 241 : i32
    %24 = tpu.dynamic_rotate %0 by %c241_i32 dim 1 : vector<8x256xf32>, i32 -> vector<8x256xf32>
    %c48 = arith.constant 48 : index
    %c0_20 = arith.constant 0 : index
    %25 = vector.load %arg3[%c48, %c0_20] : memref<72x256xf32, #tpu.memory_space<vmem>>, vector<8x256xf32>
    %26 = arith.mulf %24, %25 : vector<8x256xf32>
    %c48_21 = arith.constant 48 : index
    %c0_22 = arith.constant 0 : index
    %27 = vector.load %arg10[%c48_21, %c0_22] : memref<72x256xf32, #tpu.memory_space<vmem>>, vector<8x256xf32>
    tpu.vector_store %arg10[%c48_21, %c0_22], %26 {strides = array<i32>} : memref<72x256xf32, #tpu.memory_space<vmem>>, vector<8x256xf32>,
    %c240_i32 = arith.constant 240 : i32
    %28 = tpu.dynamic_rotate %0 by %c240_i32 dim 1 : vector<8x256xf32>, i32 -> vector<8x256xf32>
    %c56 = arith.constant 56 : index
    %c0_23 = arith.constant 0 : index
    %29 = vector.load %arg3[%c56, %c0_23] : memref<72x256xf32, #tpu.memory_space<vmem>>, vector<8x256xf32>
    %30 = arith.mulf %28, %29 : vector<8x256xf32>
    %c56_24 = arith.constant 56 : index
    %c0_25 = arith.constant 0 : index
    %31 = vector.load %arg10[%c56_24, %c0_25] : memref<72x256xf32, #tpu.memory_space<vmem>>, vector<8x256xf32>
    tpu.vector_store %arg10[%c56_24, %c0_25], %30 {strides = array<i32>} : memref<72x256xf32, #tpu.memory_space<vmem>>, vector<8x256xf32>,
    %c239_i32 = arith.constant 239 : i32
    %32 = tpu.dynamic_rotate %0 by %c239_i32 dim 1 : vector<8x256xf32>, i32 -> vector<8x256xf32>
    %c64 = arith.constant 64 : index
    %c0_26 = arith.constant 0 : index
    %33 = vector.load %arg3[%c64, %c0_26] : memref<72x256xf32, #tpu.memory_space<vmem>>, vector<8x256xf32>
    %34 = arith.mulf %32, %33 : vector<8x256xf32>
    %c64_27 = arith.constant 64 : index
    %c0_28 = arith.constant 0 : index
    %35 = vector.load %arg10[%c64_27, %c0_28] : memref<72x256xf32, #tpu.memory_space<vmem>>, vector<8x256xf32>
    tpu.vector_store %arg10[%c64_27, %c0_28], %34 {strides = array<i32>} : memref<72x256xf32, #tpu.memory_space<vmem>>, vector<8x256xf32>,
    %c0_29 = arith.constant 0 : index
    %c0_30 = arith.constant 0 : index
    %36 = vector.load %arg4[%c0_29, %c0_30] : memref<8x72xf32, #tpu.memory_space<vmem>>, vector<8x72xf32>
    %c0_31 = arith.constant 0 : index
    %c0_32 = arith.constant 0 : index
    %37 = vector.load %arg10[%c0_31, %c0_32] : memref<72x256xf32, #tpu.memory_space<vmem>>, vector<72x256xf32>
    %cst = arith.constant dense<0.000000e+00> : vector<8x256xf32>
    %38 = tpu.matmul %36, %37, %cst {dimension_numbers = #tpu.dot_dimension_numbers<[1], [0], [0], [1], [0, 0, 1, 1], [], []>} : vector<8x72xf32>, vector<72x256xf32>, vector<8x256xf32> -> vector<8x256xf32>
    %c0_33 = arith.constant 0 : index
    %c0_34 = arith.constant 0 : index
    %39 = vector.load %arg7[%c0_33, %c0_34] : memref<8x256xf32, #tpu.memory_space<vmem>>, vector<8x256xf32>
    tpu.vector_store %arg7[%c0_33, %c0_34], %38 {strides = array<i32>} : memref<8x256xf32, #tpu.memory_space<vmem>>, vector<8x256xf32>,
    %c0_i32 = arith.constant 0 : i32
    %40 = arith.cmpi eq, %arg1, %c0_i32 : i32
    %41 = arith.extui %40 : i1 to i32
    %c0_i32_35 = arith.constant 0 : i32
    %42 = arith.cmpi ne, %41, %c0_i32_35 : i32
    scf.if %42 {
      %cst_50 = arith.constant 0.000000e+00 : f32
      %61 = vector.broadcast %cst_50 : f32 to vector<1x8x128xf32>
      %c0_51 = arith.constant 0 : index
      %c0_52 = arith.constant 0 : index
      %c0_53 = arith.constant 0 : index
      %62 = vector.load %arg8[%c0_51, %c0_52, %c0_53] : memref<1x8x128xf32, #tpu.memory_space<vmem>>, vector<1x8x128xf32>
      tpu.vector_store %arg8[%c0_51, %c0_52, %c0_53], %61 {strides = array<i32>} : memref<1x8x128xf32, #tpu.memory_space<vmem>>, vector<1x8x128xf32>,
      %cst_54 = arith.constant 0.000000e+00 : f32
      %63 = vector.broadcast %cst_54 : f32 to vector<1x8x128xf32>
      %c0_55 = arith.constant 0 : index
      %c0_56 = arith.constant 0 : index
      %c0_57 = arith.constant 0 : index
      %64 = vector.load %arg9[%c0_55, %c0_56, %c0_57] : memref<1x8x128xf32, #tpu.memory_space<vmem>>, vector<1x8x128xf32>
      tpu.vector_store %arg9[%c0_55, %c0_56, %c0_57], %63 {strides = array<i32>} : memref<1x8x128xf32, #tpu.memory_space<vmem>>, vector<1x8x128xf32>,
    } else {
    }
    %cst_36 = arith.constant 0.000000e+00 : f32
    %43 = vector.broadcast %cst_36 : f32 to vector<8x128xf32>
    %cst_37 = arith.constant 0.000000e+00 : f32
    %44 = vector.broadcast %cst_37 : f32 to vector<8x128xf32>
    %45 = vector.extract_strided_slice %38 {offsets = [0, 0], sizes = [8, 128], strides = [1, 1]} : vector<8x256xf32> to vector<8x128xf32>
    %46 = arith.addf %43, %45 : vector<8x128xf32>
    %47 = arith.mulf %45, %45 : vector<8x128xf32>
    %48 = arith.addf %44, %47 : vector<8x128xf32>
    %49 = vector.extract_strided_slice %38 {offsets = [0, 128], sizes = [8, 128], strides = [1, 1]} : vector<8x256xf32> to vector<8x128xf32>
    %50 = arith.addf %46, %49 : vector<8x128xf32>
    %51 = arith.mulf %49, %49 : vector<8x128xf32>
    %52 = arith.addf %48, %51 : vector<8x128xf32>
    %c0_38 = arith.constant 0 : index
    %c0_39 = arith.constant 0 : index
    %c0_40 = arith.constant 0 : index
    %53 = vector.load %arg8[%c0_38, %c0_39, %c0_40] : memref<1x8x128xf32, #tpu.memory_space<vmem>>, vector<1x8x128xf32>
    %54 = vector.shape_cast %50 : vector<8x128xf32> to vector<1x8x128xf32>
    %55 = arith.addf %53, %54 : vector<1x8x128xf32>
    %c0_41 = arith.constant 0 : index
    %c0_42 = arith.constant 0 : index
    %c0_43 = arith.constant 0 : index
    %56 = vector.load %arg8[%c0_41, %c0_42, %c0_43] : memref<1x8x128xf32, #tpu.memory_space<vmem>>, vector<1x8x128xf32>
    tpu.vector_store %arg8[%c0_41, %c0_42, %c0_43], %55 {strides = array<i32>} : memref<1x8x128xf32, #tpu.memory_space<vmem>>, vector<1x8x128xf32>,
    %c0_44 = arith.constant 0 : index
    %c0_45 = arith.constant 0 : index
    %c0_46 = arith.constant 0 : index
    %57 = vector.load %arg9[%c0_44, %c0_45, %c0_46] : memref<1x8x128xf32, #tpu.memory_space<vmem>>, vector<1x8x128xf32>
    %58 = vector.shape_cast %52 : vector<8x128xf32> to vector<1x8x128xf32>
    %59 = arith.addf %57, %58 : vector<1x8x128xf32>
    %c0_47 = arith.constant 0 : index
    %c0_48 = arith.constant 0 : index
    %c0_49 = arith.constant 0 : index
    %60 = vector.load %arg9[%c0_47, %c0_48, %c0_49] : memref<1x8x128xf32, #tpu.memory_space<vmem>>, vector<1x8x128xf32>
    tpu.vector_store %arg9[%c0_47, %c0_48, %c0_49], %59 {strides = array<i32>} : memref<1x8x128xf32, #tpu.memory_space<vmem>>, vector<1x8x128xf32>,
    return
  }
  func.func @transform_0(%arg0: i32, %arg1: i32) -> (i32, i32) {
    %c1_i32 = arith.constant 1 : i32
    %0 = arith.muli %arg0, %c1_i32 : i32
    %1 = arith.addi %0, %arg1 : i32
    %c0_i32 = arith.constant 0 : i32
    %c0_i32_0 = arith.constant 0 : i32
    return %c0_i32, %1 : i32, i32
  }
  func.func @transform_1(%arg0: i32, %arg1: i32) -> (i32, i32) {
    %c0_i32 = arith.constant 0 : i32
    %c0_i32_0 = arith.constant 0 : i32
    %c0_i32_1 = arith.constant 0 : i32
    return %c0_i32, %c0_i32_0 : i32, i32
  }
  func.func @transform_2(%arg0: i32, %arg1: i32) -> (i32, i32) {
    %c0_i32 = arith.constant 0 : i32
    %c0_i32_0 = arith.constant 0 : i32
    %c0_i32_1 = arith.constant 0 : i32
    return %c0_i32, %c0_i32_0 : i32, i32
  }
  func.func @transform_3(%arg0: i32, %arg1: i32) -> (i32, i32) {
    %c0_i32 = arith.constant 0 : i32
    %c0_i32_0 = arith.constant 0 : i32
    %c0_i32_1 = arith.constant 0 : i32
    return %c0_i32, %c0_i32_0 : i32, i32
  }
  func.func @transform_4(%arg0: i32, %arg1: i32) -> (i32, i32) {
    %c0_i32 = arith.constant 0 : i32
    %c0_i32_0 = arith.constant 0 : i32
    %c0_i32_1 = arith.constant 0 : i32
    return %c0_i32, %c0_i32_0 : i32, i32
  }
  func.func @transform_5(%arg0: i32, %arg1: i32) -> (i32, i32) {
    %c1_i32 = arith.constant 1 : i32
    %0 = arith.muli %arg0, %c1_i32 : i32
    %1 = arith.addi %0, %arg1 : i32
    %c0_i32 = arith.constant 0 : i32
    %c0_i32_0 = arith.constant 0 : i32
    return %c0_i32, %1 : i32, i32
  }
  func.func @transform_6(%arg0: i32, %arg1: i32) -> (i32, i32, i32) {
    %c0_i32 = arith.constant 0 : i32
    %c0_i32_0 = arith.constant 0 : i32
    %c0_i32_1 = arith.constant 0 : i32
    return %arg0, %c0_i32, %c0_i32_0 : i32, i32, i32
  }
  func.func @transform_7(%arg0: i32, %arg1: i32) -> (i32, i32, i32) {
    %c0_i32 = arith.constant 0 : i32
    %c0_i32_0 = arith.constant 0 : i32
    %c0_i32_1 = arith.constant 0 : i32
    return %arg0, %c0_i32, %c0_i32_0 : i32, i32, i32
  }
}

</mosaic_0001>

<llo_original>
// kernel: tpu_custom_call.1
$region0: #{tpu_custom_call.1}
  #allocation0 [shape = 'u32[]', space=smem, size = 0x4, offset = 0x4, fixed_abs, tag = 'smem constant byte address 0x4 - core index']
  #allocation1 [shape = 'u32[72,128]{1,0:T(1,128)}', space=vmem, size = 0x9000, scoped, tag = 'internal scratch']
  #allocation2 [shape = 'f32[72,256]{1,0:T(8,128)}', space=vmem, size = 0x12000, scoped, tag = 'scratch operand']
  %s0 = inlined_call_operand.hbm [shape: f32[8,512], index: 0, kind: input, shape index: {}]
  %s1 = inlined_call_operand.hbm [shape: f32[72,256], index: 1, kind: input, shape index: {}]
  %s2 = inlined_call_operand.vmem [shape: f32[8,72], index: 2, kind: input, shape index: {}]
  %s3 = inlined_call_operand.vmem [shape: f32[8,1], index: 3, kind: input, shape index: {}]
  %s4 = inlined_call_operand.vmem [shape: f32[8,1], index: 4, kind: input, shape index: {}]
  %s5 = inlined_call_operand.hbm [shape: f32[8,512], index: 5, kind: output, shape index: {0}]
  %s6 = inlined_call_operand.hbm [shape: f32[2,8,128], index: 6, kind: output, shape index: {1}]
  %s7 = inlined_call_operand.hbm [shape: f32[2,8,128], index: 7, kind: output, shape index: {2}]
  %8 = xla_tuple %s5, %s6, %s7
  %s9 = sld [smem:[#allocation0]]
  $region81: #{tpu_custom_call.1} parent=0
    _
  %s11 = ssub.s32 1, %s9
  %s12 = scalar_select 0, %s11, %s9
  $region1: #{tpu_custom_call.1} parent=0
    #allocation3 [shape = 'u8[16384]{0}', space=vmem, size = 0x4000, scoped, tag = 'input window, operand 0']
    #allocation4 [shape = 's32[2]{0}', space=sflag, size = 0x8, scoped, tag = 'scoped memory for tpu_custom_call.1']
    #allocation5 [shape = 's32[2]{0}', space=sflag, size = 0x8, scoped, tag = 'scoped memory for tpu_custom_call.1']
    #allocation6 [shape = 'u8[73728]{0}', space=vmem, size = 0x12000, scoped, tag = 'input window, operand 1, single buffered']
    #allocation7 [shape = 's32[1]{0}', space=sflag, size = 0x4, scoped, tag = 'scoped memory for tpu_custom_call.1']
    #allocation8 [shape = 'u8[16384]{0}', space=vmem, size = 0x4000, scoped, tag = 'output window, operand 0']
    #allocation9 [shape = 'u8[8192]{0}', space=vmem, size = 0x2000, scoped, tag = 'output window, operand 1']
    #allocation10 [shape = 's32[2]{0}', space=sflag, size = 0x8, scoped, tag = 'scoped memory for tpu_custom_call.1']
    #allocation11 [shape = 'u8[8192]{0}', space=vmem, size = 0x2000, scoped, tag = 'output window, operand 2']
    %13 = vsyncpa [#allocation4], 0
    %s14 = scalar_lea.sflag [#allocation4], 1
    %15 = vsyncpa %s14, 0
    %16 = vsyncpa [#allocation7], 0
    %17 = vsyncpa [#allocation5], 0
    %s18 = scalar_lea.sflag [#allocation5], 1
    %19 = vsyncpa %s18, 0
    %20 = vsyncpa [#allocation10], 0
    %s21 = scalar_lea.sflag [#allocation10], 1
    %22 = vsyncpa %s21, 0
    loop: start=0, step=1, limit=4
    $region2: #{tpu_custom_call.1} parent=1 // loop_pre_header
      _
    $region3: #{tpu_custom_call.1} parent=1 // loop_header
      %s24 = sphi 0, %s28
      %p25 = scmp.ge.s32.totalorder %s24, 4
      %s31 = sphi 0, %s43
      %s32 = sphi 0, %s39
      %s33 = sphi 0, %s31
      %s34 = sphi 0, %s32
      %s35 = sphi 0, %s33
      %s36 = sphi 0, %s34
      %s48 = sphi 0, %s50
      %s51 = sphi 0, %s48
      %s52 = sphi 0, %s51
      %s68 = sphi 0, %s52
      %s72 = sphi 0, %s72
      %s74 = sphi 0, %s72
      %s75 = sphi 0, %s74
      %s89 = sphi 0, %s75
      %s93 = sphi 0, %s93
      %s95 = sphi 0, %s93
      %s96 = sphi 0, %s95
      %s110 = sphi 0, %s96
      %s114 = sphi 0, %s114
      %s116 = sphi 0, %s114
      %s117 = sphi 0, %s116
      %s131 = sphi 0, %s117
      %s135 = sphi 0, %s135
      %s137 = sphi 0, %s135
      %s138 = sphi 0, %s137
      %s152 = sphi 0, %s138
      %s160 = sphi 0, %s162
      %s163 = sphi 0, %s160
      %s164 = sphi 0, %s163
      %s180 = sphi 0, %s164
      %s186 = sphi 0, %s188
      %s189 = sphi 0, %s186
      %s190 = sphi 0, %s189
      %s206 = sphi 0, %s190
      %s212 = sphi 0, %s214
      %s215 = sphi 0, %s212
      %s216 = sphi 0, %s215
      %s232 = sphi 0, %s216
    $region4: #{tpu_custom_call.1} parent=1 // loop_header_branch
      %27 = sbr.rel (%p25) target = $region8
    $region5: #{tpu_custom_call.1} parent=1 // loop_body
      %s29 = ssub.s32 %s24, 1
      %s30 = ssub.s32 %s24, 2
      %s37 = sadd.s32 1, %s32
      %p38 = scmp.ge.s32.totalorder %s37, 1
      %s39 = scalar_select %p38, 0, %s37
      %s40 = sadd.s32 1, %s31
      %s41 = scalar_select %p38, %s40, %s31
      %p42 = scmp.ge.s32.totalorder %s41, 2
      %s43 = scalar_select %p42, 0, %s41
      %s44 = sadd.s32 %s31, %s32
      %s45 = sadd.s32 %s43, %s39
      %s46 = ssub.s32 %s44, %s45
      %p47 = scmp.eq.s32.totalorder %s46, 0
      %s49 = sadd.s32 %s48, 1
      %s50 = scalar_select %p47, %s48, %s49
      %p53 = pneg %p47
      %p54 = scmp.eq.s32.totalorder %s24, 1
      %p55 = por %p53, %p54
      %p56 = scmp.ne.s32.totalorder %s48, %s51
      %p57 = scmp.eq.s32.totalorder %s24, 0
      %p58 = por %p56, %p57
      %p59 = scmp.ne.s32.totalorder %s48, %s51
      %p60 = scmp.eq.s32.totalorder %s29, 1
      %p61 = por %p59, %p60
      %p62 = scmp.ne.s32.totalorder %s51, %s52
      %p63 = scmp.eq.s32.totalorder %s29, 0
      %p64 = por %p62, %p63
      %p65 = scmp.ne.s32.totalorder %s51, %s52
      %p66 = scmp.eq.s32.totalorder %s30, 1
      %p67 = por %p65, %p66
      %p69 = scmp.ne.s32.totalorder %s52, %s68
      %p70 = scmp.eq.s32.totalorder %s30, 0
      %p71 = por %p69, %p70
      %s73 = sadd.s32 %s72, 1
      %p76 = scmp.eq.s32.totalorder %s24, 1
      %p77 = scmp.ne.s32.totalorder %s72, %s74
      %p78 = scmp.eq.s32.totalorder %s24, 0
      %p79 = por %p77, %p78
      %p80 = scmp.ne.s32.totalorder %s72, %s74
      %p81 = scmp.eq.s32.totalorder %s29, 1
      %p82 = por %p80, %p81
      %p83 = scmp.ne.s32.totalorder %s74, %s75
      %p84 = scmp.eq.s32.totalorder %s29, 0
      %p85 = por %p83, %p84
      %p86 = scmp.ne.s32.totalorder %s74, %s75
      %p87 = scmp.eq.s32.totalorder %s30, 1
      %p88 = por %p86, %p87
      %p90 = scmp.ne.s32.totalorder %s75, %s89
      %p91 = scmp.eq.s32.totalorder %s30, 0
      %p92 = por %p90, %p91
      %s94 = sadd.s32 %s93, 1
      %p97 = scmp.eq.s32.totalorder %s24, 1
      %p98 = scmp.ne.s32.totalorder %s93, %s95
      %p99 = scmp.eq.s32.totalorder %s24, 0
      %p100 = por %p98, %p99
      %p101 = scmp.ne.s32.totalorder %s93, %s95
      %p102 = scmp.eq.s32.totalorder %s29, 1
      %p103 = por %p101, %p102
      %p104 = scmp.ne.s32.totalorder %s95, %s96
      %p105 = scmp.eq.s32.totalorder %s29, 0
      %p106 = por %p104, %p105
      %p107 = scmp.ne.s32.totalorder %s95, %s96
      %p108 = scmp.eq.s32.totalorder %s30, 1
      %p109 = por %p107, %p108
      %p111 = scmp.ne.s32.totalorder %s96, %s110
      %p112 = scmp.eq.s32.totalorder %s30, 0
      %p113 = por %p111, %p112
      %s115 = sadd.s32 %s114, 1
      %p118 = scmp.eq.s32.totalorder %s24, 1
      %p119 = scmp.ne.s32.totalorder %s114, %s116
      %p120 = scmp.eq.s32.totalorder %s24, 0
      %p121 = por %p119, %p120
      %p122 = scmp.ne.s32.totalorder %s114, %s116
      %p123 = scmp.eq.s32.totalorder %s29, 1
      %p124 = por %p122, %p123
      %p125 = scmp.ne.s32.totalorder %s116, %s117
      %p126 = scmp.eq.s32.totalorder %s29, 0
      %p127 = por %p125, %p126
      %p128 = scmp.ne.s32.totalorder %s116, %s117
      %p129 = scmp.eq.s32.totalorder %s30, 1
      %p130 = por %p128, %p129
      %p132 = scmp.ne.s32.totalorder %s117, %s131
      %p133 = scmp.eq.s32.totalorder %s30, 0
      %p134 = por %p132, %p133
      %s136 = sadd.s32 %s135, 1
      %p139 = scmp.eq.s32.totalorder %s24, 1
      %p140 = scmp.ne.s32.totalorder %s135, %s137
      %p141 = scmp.eq.s32.totalorder %s24, 0
      %p142 = por %p140, %p141
      %p143 = scmp.ne.s32.totalorder %s135, %s137
      %p144 = scmp.eq.s32.totalorder %s29, 1
      %p145 = por %p143, %p144
      %p146 = scmp.ne.s32.totalorder %s137, %s138
      %p147 = scmp.eq.s32.totalorder %s29, 0
      %p148 = por %p146, %p147
      %p149 = scmp.ne.s32.totalorder %s137, %s138
      %p150 = scmp.eq.s32.totalorder %s30, 1
      %p151 = por %p149, %p150
      %p153 = scmp.ne.s32.totalorder %s138, %s152
      %p154 = scmp.eq.s32.totalorder %s30, 0
      %p155 = por %p153, %p154
      %s156 = sadd.s32 %s31, %s32
      %s157 = sadd.s32 %s43, %s39
      %s158 = ssub.s32 %s156, %s157
      %p159 = scmp.eq.s32.totalorder %s158, 0
      %s161 = sadd.s32 %s160, 1
      %s162 = scalar_select %p159, %s160, %s161
      %p165 = pneg %p159
      %p166 = scmp.eq.s32.totalorder %s24, 1
      %p167 = por %p165, %p166
      %p168 = scmp.ne.s32.totalorder %s160, %s163
      %p169 = scmp.eq.s32.totalorder %s24, 0
      %p170 = por %p168, %p169
      %p171 = scmp.ne.s32.totalorder %s160, %s163
      %p172 = scmp.eq.s32.totalorder %s29, 1
      %p173 = por %p171, %p172
      %p174 = scmp.ne.s32.totalorder %s163, %s164
      %p175 = scmp.eq.s32.totalorder %s29, 0
      %p176 = por %p174, %p175
      %p177 = scmp.ne.s32.totalorder %s163, %s164
      %p178 = scmp.eq.s32.totalorder %s30, 1
      %p179 = por %p177, %p178
      %p181 = scmp.ne.s32.totalorder %s164, %s180
      %p182 = scmp.eq.s32.totalorder %s30, 0
      %p183 = por %p181, %p182
      %s184 = ssub.s32 %s31, %s43
      %p185 = scmp.eq.s32.totalorder %s184, 0
      %s187 = sadd.s32 %s186, 1
      %s188 = scalar_select %p185, %s186, %s187
      %p191 = pneg %p185
      %p192 = scmp.eq.s32.totalorder %s24, 1
      %p193 = por %p191, %p192
      %p194 = scmp.ne.s32.totalorder %s186, %s189
      %p195 = scmp.eq.s32.totalorder %s24, 0
      %p196 = por %p194, %p195
      %p197 = scmp.ne.s32.totalorder %s186, %s189
      %p198 = scmp.eq.s32.totalorder %s29, 1
      %p199 = por %p197, %p198
      %p200 = scmp.ne.s32.totalorder %s189, %s190
      %p201 = scmp.eq.s32.totalorder %s29, 0
      %p202 = por %p200, %p201
      %p203 = scmp.ne.s32.totalorder %s189, %s190
      %p204 = scmp.eq.s32.totalorder %s30, 1
      %p205 = por %p203, %p204
      %p207 = scmp.ne.s32.totalorder %s190, %s206
      %p208 = scmp.eq.s32.totalorder %s30, 0
      %p209 = por %p207, %p208
      %s210 = ssub.s32 %s31, %s43
      %p211 = scmp.eq.s32.totalorder %s210, 0
      %s213 = sadd.s32 %s212, 1
      %s214 = scalar_select %p211, %s212, %s213
      %p217 = pneg %p211
      %p218 = scmp.eq.s32.totalorder %s24, 1
      %p219 = por %p217, %p218
      %p220 = scmp.ne.s32.totalorder %s212, %s215
      %p221 = scmp.eq.s32.totalorder %s24, 0
      %p222 = por %p220, %p221
      %p223 = scmp.ne.s32.totalorder %s212, %s215
      %p224 = scmp.eq.s32.totalorder %s29, 1
      %p225 = por %p223, %p224
      %p226 = scmp.ne.s32.totalorder %s215, %s216
      %p227 = scmp.eq.s32.totalorder %s29, 0
      %p228 = por %p226, %p227
      %p229 = scmp.ne.s32.totalorder %s215, %s216
      %p230 = scmp.eq.s32.totalorder %s30, 1
      %p231 = por %p229, %p230
      %p233 = scmp.ne.s32.totalorder %s216, %s232
      %p234 = scmp.eq.s32.totalorder %s30, 0
      %p235 = por %p233, %p234
      %p236 = scmp.le.s32.totalorder 1, %s24
      %p237 = scmp.lt.s32.totalorder %s24, 3
      %p238 = pnand %p236, %p237
      %p239 = pneg %p238
      // Predicated region
      $region9: #{tpu_custom_call.1} parent=5 // pred_check
        _
      $region10: #{tpu_custom_call.1} parent=5 // pred_check_branch
        %241 = sbr.rel (%p238) target = $region12
      $region11: #{tpu_custom_call.1} parent=5 // pred_region
        %s242 = ssub.s32 %s24, 1
        // Predicated region
        $region13: #{tpu_custom_call.1} parent=11 // pred_check
          %p243 = pneg %p85
        $region14: #{tpu_custom_call.1} parent=11 // pred_check_branch
          %245 = sbr.rel (%p243) target = $region16
        $region15: #{tpu_custom_call.1} parent=11 // pred_region
          %247 = vsyncadd [#allocation7], 0
          %s248 = sshll.u32 %s1, 4
          %s249 = int_to_ptr.hbm [resolvable:$true] %s248
          %s250 = sshll.u32 [#allocation6], 4
          %s251 = int_to_ptr.vmem [resolvable:$true] %s250
          %256 = dma.hbm_to_vmem [thread:$0]  %s249, 2304, %s251, [#allocation7], 256, 256, 16
        $region16: #{tpu_custom_call.1} parent=11 // pred_fallthru
          _
        // Predicated region
        $region17: #{tpu_custom_call.1} parent=11 // pred_check
          %p257 = pneg %p106
        $region18: #{tpu_custom_call.1} parent=11 // pred_check_branch
          %259 = sbr.rel (%p257) target = $region20
        $region19: #{tpu_custom_call.1} parent=11 // pred_region
          _
        $region20: #{tpu_custom_call.1} parent=11 // pred_fallthru
          _
        // Predicated region
        $region21: #{tpu_custom_call.1} parent=11 // pred_check
          %p260 = pneg %p127
        $region22: #{tpu_custom_call.1} parent=11 // pred_check_branch
          %262 = sbr.rel (%p260) target = $region24
        $region23: #{tpu_custom_call.1} parent=11 // pred_region
          _
        $region24: #{tpu_custom_call.1} parent=11 // pred_fallthru
          _
        // Predicated region
        $region25: #{tpu_custom_call.1} parent=11 // pred_check
          %p263 = pneg %p148
        $region26: #{tpu_custom_call.1} parent=11 // pred_check_branch
          %265 = sbr.rel (%p263) target = $region28
        $region27: #{tpu_custom_call.1} parent=11 // pred_region
          _
        $region28: #{tpu_custom_call.1} parent=11 // pred_fallthru
          _
      $region12: #{tpu_custom_call.1} parent=5 // pred_fallthru
        _
      %p266 = scmp.lt.s32.totalorder %s24, 2
      // Predicated region
      $region29: #{tpu_custom_call.1} parent=5 // pred_check
        %p267 = pneg %p266
      $region30: #{tpu_custom_call.1} parent=5 // pred_check_branch
        %269 = sbr.rel (%p267) target = $region32
      $region31: #{tpu_custom_call.1} parent=5 // pred_region
        // Predicated region
        $region33: #{tpu_custom_call.1} parent=31 // pred_check
          %p270 = pneg %p58
        $region34: #{tpu_custom_call.1} parent=31 // pred_check_branch
          %272 = sbr.rel (%p270) target = $region36
        $region35: #{tpu_custom_call.1} parent=31 // pred_region
          %s273 = sand.u32 %s48, 1
          %s274 = scalar_lea.sflag [#allocation4], %s273
          %s275 = sand.u32 %s48, 1
          %s276 = smul.addr %s275, 16
          %s277 = scalar_lea.vmem [#allocation3], %s276
          %s278 = sadd.s32 %s31, %s32
          %s279 = smul.u32 2, %s278
          %281 = vsyncadd %s274, 0
          %s282 = smul.addr %s279, 8
          %s283 = scalar_lea.hbm %s0, %s282
          %s285 = sshll.u32 %s283, 4
          %s286 = int_to_ptr.hbm [resolvable:$true] %s285
          %s287 = sshll.u32 %s277, 4
          %s288 = int_to_ptr.vmem [resolvable:$true] %s287
          %290 = dma.hbm_to_vmem [thread:$0]  %s286, 256, %s288, %s274
        $region36: #{tpu_custom_call.1} parent=31 // pred_fallthru
          _
      $region32: #{tpu_custom_call.1} parent=5 // pred_fallthru
        _
      %p291 = scmp.le.s32.totalorder 1, %s24
      %p292 = scmp.lt.s32.totalorder %s24, 3
      %p293 = pnand %p291, %p292
      %p294 = pneg %p293
      // Predicated region
      $region37: #{tpu_custom_call.1} parent=5 // pred_check
        _
      $region38: #{tpu_custom_call.1} parent=5 // pred_check_branch
        %296 = sbr.rel (%p293) target = $region40
      $region39: #{tpu_custom_call.1} parent=5 // pred_region
        %s297 = ssub.s32 %s24, 1
        %s298 = sand.u32 %s51, 1
        %s299 = scalar_lea.sflag [#allocation4], %s298
        %s300 = sand.u32 %s51, 1
        %s301 = smul.addr %s300, 16
        %s302 = scalar_lea.vmem [#allocation3], %s301
        // Predicated region
        $region41: #{tpu_custom_call.1} parent=39 // pred_check
          %p303 = pneg %p64
        $region42: #{tpu_custom_call.1} parent=39 // pred_check_branch
          %305 = sbr.rel (%p303) target = $region44
        $region43: #{tpu_custom_call.1} parent=39 // pred_region
          %307 = dma.done %s299, 256
        $region44: #{tpu_custom_call.1} parent=39 // pred_fallthru
          _
        // Predicated region
        $region45: #{tpu_custom_call.1} parent=39 // pred_check
          %p308 = pneg %p85
        $region46: #{tpu_custom_call.1} parent=39 // pred_check_branch
          %310 = sbr.rel (%p308) target = $region48
        $region47: #{tpu_custom_call.1} parent=39 // pred_region
          %312 = dma.done [#allocation7], 2304
        $region48: #{tpu_custom_call.1} parent=39 // pred_fallthru
          _
        %s313 = sand.u32 %s51, 1
        %s314 = scalar_lea.sflag [#allocation4], %s313
        %s315 = sand.u32 %s51, 1
        %s316 = smul.addr %s315, 16
        %s317 = scalar_lea.vmem [#allocation3], %s316
        %p318 = pneg %p64
        %p319 = pneg %p61
        %p320 = pneg %p85
        %p321 = pneg %p82
        %p322 = pneg %p106
        %p323 = pneg %p103
        %p324 = pneg %p127
        %p325 = pneg %p124
        %p326 = pneg %p148
        %p327 = pneg %p145
        %p328 = pneg %p176
        %p329 = pneg %p173
        %s330 = sand.u32 %s163, 1
        %s331 = scalar_lea.sflag [#allocation5], %s330
        %s332 = sand.u32 %s163, 1
        %s333 = smul.addr %s332, 16
        %s334 = scalar_lea.vmem [#allocation8], %s333
        %p335 = pneg %p202
        %p336 = pneg %p199
        %s337 = sand.u32 %s29, 1
        %s338 = scalar_lea.sflag [#allocation10], %s337
        %s339 = sand.u32 %s189, 1
        %s340 = smul.addr %s339, 8
        %s341 = scalar_lea.vmem [#allocation9], %s340
        %p342 = pneg %p228
        %p343 = pneg %p225
        %s344 = sand.u32 %s29, 1
        %s345 = scalar_lea.sflag [#allocation10], %s344
        %s346 = sand.u32 %s215, 1
        %s347 = smul.addr %s346, 8
        %s348 = scalar_lea.vmem [#allocation11], %s347
        %s349 = sadd.s32 %s33, %s34
        %s350 = smul.u32 2, %s349
        %s351 = sadd.s32 %s33, %s34
        %s352 = smul.u32 2, %s351
        %v353 = vld [vmem:[%s302] sm:$0xff]
        %v354 = vld [vmem:[%s302 + $0x8] sm:$0xff]
        %355 = vrot.lane.b32.xlu0 %v353, 17
        %v356 = vpop.permute.xlu0 %355
        %357 = vrot.lane.b32.xlu0 %v354, 17
        %v358 = vpop.permute.xlu0 %357
        %v359 = vlaneseq
        %v360 = vand.u32 %v359, 127
        %vm361 = vcmp.lt.s32.totalorder %v360, 17
        %v362 = vsel %vm361, %v356, %v358
        %v363 = vsel %vm361, %v358, %v356
        %v364 = vld [vmem:[#allocation6] sm:$0xff]
        %v365 = vld [vmem:[#allocation6 + $0x8] sm:$0xff]
        %v366 = vmul.f32 %v363, %v364
        %v367 = vmul.f32 %v362, %v365
        %368 = vst [vmem:[#allocation2] sm:$0xff] %v366
        %369 = vst [vmem:[#allocation2 + $0x8] sm:$0xff] %v367
        %370 = vrot.lane.b32.xlu0 %v353, 16
        %v371 = vpop.permute.xlu0 %370
        %372 = vrot.lane.b32.xlu0 %v354, 16
        %v373 = vpop.permute.xlu0 %372
        %vm374 = vcmp.lt.s32.totalorder %v360, 16
        %v375 = vsel %vm374, %v371, %v373
        %v376 = vsel %vm374, %v373, %v371
        %v377 = vld [vmem:[#allocation6 + $0x10] sm:$0xff]
        %v378 = vld [vmem:[#allocation6 + $0x18] sm:$0xff]
        %v379 = vmul.f32 %v376, %v377
        %v380 = vmul.f32 %v375, %v378
        %381 = vst [vmem:[#allocation2 + $0x10] sm:$0xff] %v379
        %382 = vst [vmem:[#allocation2 + $0x18] sm:$0xff] %v380
        %383 = vrot.lane.b32.xlu0 %v353, 15
        %v384 = vpop.permute.xlu0 %383
        %385 = vrot.lane.b32.xlu0 %v354, 15
        %v386 = vpop.permute.xlu0 %385
        %vm387 = vcmp.lt.s32.totalorder %v360, 15
        %v388 = vsel %vm387, %v384, %v386
        %v389 = vsel %vm387, %v386, %v384
        %v390 = vld [vmem:[#allocation6 + $0x20] sm:$0xff]
        %v391 = vld [vmem:[#allocation6 + $0x28] sm:$0xff]
        %v392 = vmul.f32 %v389, %v390
        %v393 = vmul.f32 %v388, %v391
        %394 = vst [vmem:[#allocation2 + $0x20] sm:$0xff] %v392
        %395 = vst [vmem:[#allocation2 + $0x28] sm:$0xff] %v393
        %396 = vrot.lane.b32.xlu0 %v353, 1
        %v397 = vpop.permute.xlu0 %396
        %398 = vrot.lane.b32.xlu0 %v354, 1
        %v399 = vpop.permute.xlu0 %398
        %vm400 = vcmp.lt.s32.totalorder %v360, 1
        %v401 = vsel %vm400, %v397, %v399
        %v402 = vsel %vm400, %v399, %v397
        %v403 = vld [vmem:[#allocation6 + $0x30] sm:$0xff]
        %v404 = vld [vmem:[#allocation6 + $0x38] sm:$0xff]
        %v405 = vmul.f32 %v402, %v403
        %v406 = vmul.f32 %v401, %v404
        %407 = vst [vmem:[#allocation2 + $0x30] sm:$0xff] %v405
        %408 = vst [vmem:[#allocation2 + $0x38] sm:$0xff] %v406
        %v409 = vld [vmem:[#allocation6 + $0x40] sm:$0xff]
        %v410 = vld [vmem:[#allocation6 + $0x48] sm:$0xff]
        %v411 = vmul.f32 %v353, %v409
        %v412 = vmul.f32 %v354, %v410
        %413 = vst [vmem:[#allocation2 + $0x40] sm:$0xff] %v411
        %414 = vst [vmem:[#allocation2 + $0x48] sm:$0xff] %v412
        %415 = vrot.lane.b32.xlu0 %v353, 127
        %v416 = vpop.permute.xlu0 %415
        %417 = vrot.lane.b32.xlu0 %v354, 127
        %v418 = vpop.permute.xlu0 %417
        %vm419 = vcmp.lt.s32.totalorder %v360, 127
        %v420 = vsel %vm419, %v416, %v418
        %v421 = vsel %vm419, %v418, %v416
        %v422 = vld [vmem:[#allocation6 + $0x50] sm:$0xff]
        %v423 = vld [vmem:[#allocation6 + $0x58] sm:$0xff]
        %v424 = vmul.f32 %v420, %v422
        %v425 = vmul.f32 %v421, %v423
        %426 = vst [vmem:[#allocation2 + $0x50] sm:$0xff] %v424
        %427 = vst [vmem:[#allocation2 + $0x58] sm:$0xff] %v425
        %428 = vrot.lane.b32.xlu0 %v353, 113
        %v429 = vpop.permute.xlu0 %428
        %430 = vrot.lane.b32.xlu0 %v354, 113
        %v431 = vpop.permute.xlu0 %430
        %vm432 = vcmp.lt.s32.totalorder %v360, 113
        %v433 = vsel %vm432, %v429, %v431
        %v434 = vsel %vm432, %v431, %v429
        %v435 = vld [vmem:[#allocation6 + $0x60] sm:$0xff]
        %v436 = vld [vmem:[#allocation6 + $0x68] sm:$0xff]
        %v437 = vmul.f32 %v433, %v435
        %v438 = vmul.f32 %v434, %v436
        %439 = vst [vmem:[#allocation2 + $0x60] sm:$0xff] %v437
        %440 = vst [vmem:[#allocation2 + $0x68] sm:$0xff] %v438
        %441 = vrot.lane.b32.xlu0 %v353, 112
        %v442 = vpop.permute.xlu0 %441
        %443 = vrot.lane.b32.xlu0 %v354, 112
        %v444 = vpop.permute.xlu0 %443
        %vm445 = vcmp.lt.s32.totalorder %v360, 112
        %v446 = vsel %vm445, %v442, %v444
        %v447 = vsel %vm445, %v444, %v442
        %v448 = vld [vmem:[#allocation6 + $0x70] sm:$0xff]
        %v449 = vld [vmem:[#allocation6 + $0x78] sm:$0xff]
        %v450 = vmul.f32 %v446, %v448
        %v451 = vmul.f32 %v447, %v449
        %452 = vst [vmem:[#allocation2 + $0x70] sm:$0xff] %v450
        %453 = vst [vmem:[#allocation2 + $0x78] sm:$0xff] %v451
        %454 = vrot.lane.b32.xlu0 %v353, 111
        %v455 = vpop.permute.xlu0 %454
        %456 = vrot.lane.b32.xlu0 %v354, 111
        %v457 = vpop.permute.xlu0 %456
        %vm458 = vcmp.lt.s32.totalorder %v360, 111
        %v459 = vsel %vm458, %v455, %v457
        %v460 = vsel %vm458, %v457, %v455
        %v461 = vld [vmem:[#allocation6 + $0x80] sm:$0xff]
        %v462 = vld [vmem:[#allocation6 + $0x88] sm:$0xff]
        %v463 = vmul.f32 %v459, %v461
        %v464 = vmul.f32 %v460, %v462
        %465 = vst [vmem:[#allocation2 + $0x80] sm:$0xff] %v463
        %466 = vst [vmem:[#allocation2 + $0x88] sm:$0xff] %v464
        %v467 = vld [vmem:[%s2] sm:$0xff]
        %v468 = vld [vmem:[#allocation2] sm:$0xff]
        %v469 = vld [vmem:[#allocation2 + $0x8] sm:$0xff]
        %v470 = vld [vmem:[#allocation2 + $0x10] sm:$0xff]
        %v471 = vld [vmem:[#allocation2 + $0x18] sm:$0xff]
        %v472 = vld [vmem:[#allocation2 + $0x20] sm:$0xff]
        %v473 = vld [vmem:[#allocation2 + $0x28] sm:$0xff]
        %v474 = vld [vmem:[#allocation2 + $0x30] sm:$0xff]
        %v475 = vld [vmem:[#allocation2 + $0x38] sm:$0xff]
        %v476 = vld [vmem:[#allocation2 + $0x40] sm:$0xff]
        %v477 = vld [vmem:[#allocation2 + $0x48] sm:$0xff]
        %v478 = vld [vmem:[#allocation2 + $0x50] sm:$0xff]
        %v479 = vld [vmem:[#allocation2 + $0x58] sm:$0xff]
        %v480 = vld [vmem:[#allocation2 + $0x60] sm:$0xff]
        %v481 = vld [vmem:[#allocation2 + $0x68] sm:$0xff]
        %v482 = vld [vmem:[#allocation2 + $0x70] sm:$0xff]
        %v483 = vld [vmem:[#allocation2 + $0x78] sm:$0xff]
        %v484 = vld [vmem:[#allocation2 + $0x80] sm:$0xff]
        %v485 = vld [vmem:[#allocation2 + $0x88] sm:$0xff]
        %vm486 = vcmask 588800
        %v488 = vsel %vm486, %v467, 0
        %490 = vmatpush.msra.mxu0 0.0
        %491 = vmatpush.msra.mxu0 0.0
        %492 = vmatpush.msra.mxu0 0.0
        %493 = vmatpush.msra.mxu0 0.0
        %494 = vmatpush.msra.mxu0 0.0
        %495 = vmatpush.msra.mxu0 0.0
        %496 = vmatpush.msra.mxu0 0.0
        %497 = vmatpush.msra.mxu0 %v484
        %498 = vmatpush.msra.mxu0 %v482
        %499 = vmatpush.msra.mxu0 %v480
        %500 = vmatpush.msra.mxu0 %v478
        %501 = vmatpush.msra.mxu0 %v476
        %502 = vmatpush.msra.mxu0 %v474
        %503 = vmatpush.msra.mxu0 %v472
        %504 = vmatpush.msra.mxu0 %v470
        %505 = vmatpush.msra.mxu0 %v468
        %506 = vmatmul.f32.gmra.mxu0 %v488
        %v507 = vpop.f32.mrf.mxu0
        %v508 = vadd.f32 0.0, %v507
        %509 = vdwg.mxu0
        %510 = vmatpush.msra.mxu0 0.0
        %511 = vmatpush.msra.mxu0 0.0
        %512 = vmatpush.msra.mxu0 0.0
        %513 = vmatpush.msra.mxu0 0.0
        %514 = vmatpush.msra.mxu0 0.0
        %515 = vmatpush.msra.mxu0 0.0
        %516 = vmatpush.msra.mxu0 0.0
        %517 = vmatpush.msra.mxu0 %v485
        %518 = vmatpush.msra.mxu0 %v483
        %519 = vmatpush.msra.mxu0 %v481
        %520 = vmatpush.msra.mxu0 %v479
        %521 = vmatpush.msra.mxu0 %v477
        %522 = vmatpush.msra.mxu0 %v475
        %523 = vmatpush.msra.mxu0 %v473
        %524 = vmatpush.msra.mxu0 %v471
        %525 = vmatpush.msra.mxu0 %v469
        %526 = vmatmul.f32.gmra.mxu0 %v488
        %v527 = vpop.f32.mrf.mxu0
        %v528 = vadd.f32 0.0, %v527
        %529 = vdwg.mxu0
        %530 = vst [vmem:[%s334] sm:$0xff] %v508
        %531 = vst [vmem:[%s334 + $0x8] sm:$0xff] %v528
        %p532 = scmp.eq.s32.totalorder %s34, 0
        // Predicated region
        $region49: #{tpu_custom_call.1} parent=39 // pred_check
          %p533 = pneg %p532
        $region50: #{tpu_custom_call.1} parent=39 // pred_check_branch
          %535 = sbr.rel (%p533) target = $region52
        $region51: #{tpu_custom_call.1} parent=39 // pred_region
          %536 = vst [vmem:[%s341] sm:$0xff] 0.0
          %537 = vst [vmem:[%s348] sm:$0xff] 0.0
        $region52: #{tpu_custom_call.1} parent=39 // pred_fallthru
          _
        %v538 = vadd.f32 %v508, 0.0
        %v539 = vmul.f32 %v508, %v508
        %v540 = vadd.f32 %v539, 0.0
        %v541 = vadd.f32 %v538, %v528
        %v542 = vmul.f32 %v528, %v528
        %v543 = vadd.f32 %v540, %v542
        %v544 = vld [vmem:[%s341] sm:$0xff]
        %v545 = vadd.f32 %v544, %v541
        %546 = vst [vmem:[%s341] sm:$0xff] %v545
        %v547 = vld [vmem:[%s348] sm:$0xff]
        %v548 = vadd.f32 %v547, %v543
        %549 = vst [vmem:[%s348] sm:$0xff] %v548
        %s550 = sand.u32 %s163, 1
        %s551 = scalar_lea.sflag [#allocation5], %s550
        %s552 = sand.u32 %s163, 1
        %s553 = smul.addr %s552, 16
        %s554 = scalar_lea.vmem [#allocation8], %s553
        %s555 = sand.u32 %s29, 1
        %s556 = scalar_lea.sflag [#allocation10], %s555
        %s557 = sand.u32 %s189, 1
        %s558 = smul.addr %s557, 8
        %s559 = scalar_lea.vmem [#allocation9], %s558
        %s560 = sand.u32 %s29, 1
        %s561 = scalar_lea.sflag [#allocation10], %s560
        %s562 = sand.u32 %s215, 1
        %s563 = smul.addr %s562, 8
        %s564 = scalar_lea.vmem [#allocation11], %s563
        // Predicated region
        $region53: #{tpu_custom_call.1} parent=39 // pred_check
          %p565 = pneg %p173
        $region54: #{tpu_custom_call.1} parent=39 // pred_check_branch
          %567 = sbr.rel (%p565) target = $region56
        $region55: #{tpu_custom_call.1} parent=39 // pred_region
          %s568 = sadd.s32 %s33, %s34
          %s569 = smul.u32 2, %s568
          %571 = vsyncadd %s551, 0
          %s572 = smul.addr %s569, 8
          %s573 = scalar_lea.hbm %s5, %s572
          %s575 = sshll.u32 %s554, 4
          %s576 = int_to_ptr.vmem [resolvable:$true] %s575
          %s577 = sshll.u32 %s573, 4
          %s578 = int_to_ptr.hbm [resolvable:$true] %s577
          %580 = dma.vmem_to_hbm [thread:$0]  %s576, 256, %s578, %s551
        $region56: #{tpu_custom_call.1} parent=39 // pred_fallthru
          _
        // Predicated region
        $region57: #{tpu_custom_call.1} parent=39 // pred_check
          %p581 = pneg %p199
        $region58: #{tpu_custom_call.1} parent=39 // pred_check_branch
          %583 = sbr.rel (%p581) target = $region60
        $region59: #{tpu_custom_call.1} parent=39 // pred_region
          %585 = vsyncadd %s556, 0
          %s586 = smul.addr %s33, 8
          %s587 = scalar_lea.hbm %s6, %s586
          %s589 = sshll.u32 %s559, 4
          %s590 = int_to_ptr.vmem [resolvable:$true] %s589
          %s591 = sshll.u32 %s587, 4
          %s592 = int_to_ptr.hbm [resolvable:$true] %s591
          %594 = dma.vmem_to_hbm [thread:$0]  %s590, 128, %s592, %s556
        $region60: #{tpu_custom_call.1} parent=39 // pred_fallthru
          _
        // Predicated region
        $region61: #{tpu_custom_call.1} parent=39 // pred_check
          %p595 = pneg %p225
        $region62: #{tpu_custom_call.1} parent=39 // pred_check_branch
          %597 = sbr.rel (%p595) target = $region64
        $region63: #{tpu_custom_call.1} parent=39 // pred_region
          %599 = vsyncadd %s561, 0
          %s600 = smul.addr %s33, 8
          %s601 = scalar_lea.hbm %s7, %s600
          %s603 = sshll.u32 %s564, 4
          %s604 = int_to_ptr.vmem [resolvable:$true] %s603
          %s605 = sshll.u32 %s601, 4
          %s606 = int_to_ptr.hbm [resolvable:$true] %s605
          %608 = dma.vmem_to_hbm [thread:$0]  %s604, 128, %s606, %s561
        $region64: #{tpu_custom_call.1} parent=39 // pred_fallthru
          _
      $region40: #{tpu_custom_call.1} parent=5 // pred_fallthru
        _
      %p609 = scmp.le.s32.totalorder 2, %s24
      // Predicated region
      $region65: #{tpu_custom_call.1} parent=5 // pred_check
        %p610 = pneg %p609
      $region66: #{tpu_custom_call.1} parent=5 // pred_check_branch
        %612 = sbr.rel (%p610) target = $region68
      $region67: #{tpu_custom_call.1} parent=5 // pred_region
        %s613 = ssub.s32 %s24, 2
        // Predicated region
        $region69: #{tpu_custom_call.1} parent=67 // pred_check
          %p614 = pneg %p179
        $region70: #{tpu_custom_call.1} parent=67 // pred_check_branch
          %616 = sbr.rel (%p614) target = $region72
        $region71: #{tpu_custom_call.1} parent=67 // pred_region
          %s617 = sand.u32 %s164, 1
          %s618 = scalar_lea.sflag [#allocation5], %s617
          %s619 = sand.u32 %s164, 1
          %s620 = smul.addr %s619, 16
          %s621 = scalar_lea.vmem [#allocation8], %s620
          %623 = dma.done %s618, 256
        $region72: #{tpu_custom_call.1} parent=67 // pred_fallthru
          _
        // Predicated region
        $region73: #{tpu_custom_call.1} parent=67 // pred_check
          %p624 = pneg %p205
        $region74: #{tpu_custom_call.1} parent=67 // pred_check_branch
          %626 = sbr.rel (%p624) target = $region76
        $region75: #{tpu_custom_call.1} parent=67 // pred_region
          %s627 = sand.u32 %s30, 1
          %s628 = scalar_lea.sflag [#allocation10], %s627
          %s629 = sand.u32 %s190, 1
          %s630 = smul.addr %s629, 8
          %s631 = scalar_lea.vmem [#allocation9], %s630
          %633 = dma.done %s628, 128
        $region76: #{tpu_custom_call.1} parent=67 // pred_fallthru
          _
        // Predicated region
        $region77: #{tpu_custom_call.1} parent=67 // pred_check
          %p634 = pneg %p231
        $region78: #{tpu_custom_call.1} parent=67 // pred_check_branch
          %636 = sbr.rel (%p634) target = $region80
        $region79: #{tpu_custom_call.1} parent=67 // pred_region
          %s637 = sand.u32 %s30, 1
          %s638 = scalar_lea.sflag [#allocation10], %s637
          %s639 = sand.u32 %s216, 1
          %s640 = smul.addr %s639, 8
          %s641 = scalar_lea.vmem [#allocation11], %s640
          %643 = dma.done %s638, 128
        $region80: #{tpu_custom_call.1} parent=67 // pred_fallthru
          _
      $region68: #{tpu_custom_call.1} parent=5 // pred_fallthru
        _
    $region6: #{tpu_custom_call.1} parent=1 // loop_footer
      %s28 = sadd.s32 1, %s24
    $region7: #{tpu_custom_call.1} parent=1 // loop_footer_branch
      %23 = sbr.rel target = $region3
    $region8: #{tpu_custom_call.1} parent=1 // loop_exit
      _
    %644 = vsyncpa [#allocation4], 1
    %s645 = scalar_lea.sflag [#allocation4], 1
    %646 = vsyncpa %s645, 1
    %647 = vsyncpa [#allocation7], 1
    %648 = vsyncpa [#allocation5], 1
    %s649 = scalar_lea.sflag [#allocation5], 1
    %650 = vsyncpa %s649, 1
    %651 = vsyncpa [#allocation10], 1
    %s652 = scalar_lea.sflag [#allocation10], 1
    %653 = vsyncpa %s652, 1

</llo_original>
